<compile_context>
chip_gen: v7x
topology: tpu7x:2x2x1
jax: 0.10.0
libtpu: 0.0.40
codegen_flags: <defaults>
</compile_context>

<pallas_src>
import jax
import jax.numpy as jnp
from jax.experimental import pallas as pl
from jax.experimental.pallas import tpu as pltpu

_GN_EPS = 1e-5

# Pipelined footprint budget (in + out blocks, double buffered => 4 tiles).
# Sized for v7x (64 MiB physical / 32 MiB default scoped VMEM); v5e/v6e have
# 128 MiB physical so this is conservative there.
_VMEM_FOOTPRINT_BUDGET = 24 * 1024 * 1024
_VMEM_LIMIT_BYTES = 32 * 1024 * 1024
_MIN_GRID_STEPS = 4  # >= 2x TensorCores on v7x, and gives the pipeline overlap


def _sqa_kernel(x_ref, p_ref, o_ref):
    # x_ref / o_ref: (TBG, 2, CH, HW)  -- half 0 = channel-attn branch input,
    #                                     half 1 = spatial (GroupNorm) branch.
    # p_ref: (4, CH, 1) rows = [cweight, cbias, sweight*gamma, sweight*beta+sbias]
    x0 = x_ref[:, 0:1, :, :]            # (TBG, 1, CH, HW)
    x1 = x_ref[:, 1:2, :, :]            # (TBG, 1, CH, HW)
    inv_hw = jnp.float32(1.0 / x0.shape[-1])

    cw = p_ref[0]                       # (CH, 1)
    cb = p_ref[1]                       # (CH, 1)
    sa = p_ref[2]                       # (CH, 1)  = sweight * gn_gamma
    sb = p_ref[3]                       # (CH, 1)  = sweight * gn_beta + sbias

    # ---- channel-attention branch: x0 * sigmoid(cw * mean(x0) + cb) ----
    mean0 = jnp.sum(x0, axis=-1, keepdims=True) * inv_hw      # (TBG,1,CH,1)
    o_ref[:, 0:1, :, :] = x0 * jax.nn.sigmoid(cw * mean0 + cb)

    # ---- spatial branch: per-channel GroupNorm + folded affine + gate ----
    mean1 = jnp.sum(x1, axis=-1, keepdims=True) * inv_hw      # (TBG,1,CH,1)
    diff = x1 - mean1
    var1 = jnp.sum(diff * diff, axis=-1, keepdims=True) * inv_hw
    xhat = diff * jax.lax.rsqrt(var1 + _GN_EPS)               # (TBG,1,CH,HW)
    o_ref[:, 1:2, :, :] = x1 * jax.nn.sigmoid(sa * xhat + sb)


def _choose_bg_tile(bg, bytes_per_bg_row,
                    vmem_budget_bytes=_VMEM_FOOTPRINT_BUDGET,
                    min_steps=_MIN_GRID_STEPS):
    """Largest bg-tile that (a) keeps ~4 double-buffered tiles under the VMEM
    budget, (b) yields at least `min_steps` grid steps, (c) divides bg exactly
    so there is no ragged last block."""
    max_tile = max(1, vmem_budget_bytes // (4 * bytes_per_bg_row))
    # TODO(synk): if a single (2*CH, HW) slab exceeds the budget (very large
    # H*W, e.g. 512x512), a lane-chunked two-pass reduction is needed; not
    # implemented here.
    tile = min(bg, max_tile, max(1, pl.cdiv(bg, min_steps)))
    while bg % tile:
        tile -= 1
    return tile


def _squeeze_attention_pallas(xr, p):
    """xr: (bg, 2, ch, hw) float32; p: (4, ch, 1) float32."""
    bg, two, ch, hw = xr.shape
    bytes_per_bg_row = two * ch * hw * xr.dtype.itemsize
    tbg = _choose_bg_tile(bg, bytes_per_bg_row)
    grid = (bg // tbg,)

    x_spec = pl.BlockSpec((tbg, two, ch, hw), lambda i: (i, 0, 0, 0))
    p_spec = pl.BlockSpec((4, ch, 1), lambda i: (0, 0, 0))  # resident, 1 DMA

    return pl.pallas_call(
        _sqa_kernel,
        out_shape=jax.ShapeDtypeStruct(xr.shape, xr.dtype),
        grid_spec=pltpu.PrefetchScalarGridSpec(
            num_scalar_prefetch=0,
            grid=grid,
            in_specs=[x_spec, p_spec],
            out_specs=x_spec),
        compiler_params=pltpu.CompilerParams(
            dimension_semantics=("parallel",),
            vmem_limit_bytes=_VMEM_LIMIT_BYTES),
    )(xr, p)


def squeeze_attention_forward(x, params, *, groups):
    """Forward of SqueezeAttention.  x: (B, C, H, W) float32 NCHW."""
    b, c, h, w = x.shape
    ch = c // (2 * groups)          # channels per half-group
    bg = b * groups
    hw = h * w

    # Free (contiguous) reshape -- no HBM copy: (B,C,H,W) -> (B*G, 2, CH, HW).
    xr = x.reshape(bg, 2, ch, hw)

    cweight = params["cweight"].reshape(ch)
    cbias = params["cbias"].reshape(ch)
    sweight = params["sweight"].reshape(ch)
    sbias = params["sbias"].reshape(ch)
    gamma = params["gn_gamma"].reshape(ch)
    beta = params["gn_beta"].reshape(ch)

    # Fold GroupNorm affine and sweight/sbias into one per-channel affine:
    #   sweight*(gamma*xhat + beta) + sbias
    #     = (sweight*gamma)*xhat + (sweight*beta + sbias)
    sa = sweight * gamma
    sb = sweight * beta + sbias
    p = jnp.stack([cweight, cbias, sa, sb], axis=0).reshape(4, ch, 1)

    out = _squeeze_attention_pallas(xr, p)          # (bg, 2, ch, hw)

    # (bg, 2, ch, hw) row-major == concat([xn, xs], dim=1) -> (b, c, h, w):
    out = out.reshape(b, c, h, w)
    # channel_shuffle(groups=2): pure index permutation, one XLA transpose.
    # TODO(synk): absorb this shuffle into the consumer's channel order to
    # save one full HBM read+write pass; not expressible as a rectangular
    # output BlockSpec (stride-2 channel interleave).
    out = out.reshape(b, 2, c // 2, h, w).transpose(0, 2, 1, 3, 4).reshape(b, c, h, w)
    return out


def squeeze_attention_reference(x, params, *, groups):
    """Pure-JAX reference of the PyTorch SqueezeAttention.forward."""
    b, c, h, w = x.shape
    ch = c // (2 * groups)
    xg = x.reshape(b * groups, c // groups, h, w)
    x0, x1 = xg[:, :ch], xg[:, ch:]

    # channel-attention branch
    xn = jnp.mean(x0, axis=(2, 3), keepdims=True)
    xn = params["cweight"] * xn + params["cbias"]
    xn = x0 * jax.nn.sigmoid(xn)

    # spatial branch: GroupNorm with one channel per group == per-channel norm
    mean = jnp.mean(x1, axis=(2, 3), keepdims=True)
    var = jnp.mean((x1 - mean) ** 2, axis=(2, 3), keepdims=True)
    xhat = (x1 - mean) / jnp.sqrt(var + _GN_EPS)
    xs = xhat * params["gn_gamma"].reshape(1, ch, 1, 1) + params["gn_beta"].reshape(1, ch, 1, 1)
    xs = params["sweight"] * xs + params["sbias"]
    xs = x1 * jax.nn.sigmoid(xs)

    out = jnp.concatenate([xn, xs], axis=1)
    out = out.reshape(b, c, h, w)
    out = out.reshape(b, 2, c // 2, h, w).transpose(0, 2, 1, 3, 4).reshape(b, c, h, w)
    return out


if __name__ == "__main__":
    # Small config consistent with the module: channel divisible by 2*groups.
    B, C, H, W = 2, 32, 16, 16
    GROUPS = 4
    CH = C // (2 * GROUPS)  # 4 channels per half-group

    key = jax.random.PRNGKey(0)
    ks = jax.random.split(key, 7)

    # NOTE: the PyTorch module initializes cweight/sweight to zero (which would
    # make both sigmoid gates constant and hide the data path), so for
    # validation we use nonzero parameter values -- forward semantics are
    # identical for any parameter values.
    params = {
        "cweight": 0.5 * jax.random.normal(ks[0], (1, CH, 1, 1), jnp.float32),
        "cbias": 1.0 + 0.1 * jax.random.normal(ks[1], (1, CH, 1, 1), jnp.float32),
        "sweight": 0.5 * jax.random.normal(ks[2], (1, CH, 1, 1), jnp.float32),
        "sbias": 1.0 + 0.1 * jax.random.normal(ks[3], (1, CH, 1, 1), jnp.float32),
        "gn_gamma": 1.0 + 0.1 * jax.random.normal(ks[4], (CH,), jnp.float32),
        "gn_beta": 0.1 * jax.random.normal(ks[5], (CH,), jnp.float32),
    }
    x = jax.random.normal(ks[6], (B, C, H, W), jnp.float32)

    fwd = jax.jit(squeeze_attention_forward, static_argnames=("groups",))
    z = fwd(x, params, groups=GROUPS)
    z = jax.block_until_ready(z)

    z_ref = squeeze_attention_reference(x, params, groups=GROUPS)
    assert z.shape == (B, C, H, W)
    assert jnp.allclose(z, z_ref, atol=1e-5, rtol=1e-5), "mismatch vs JAX reference"

    print("KERNEL_OK")
</pallas_src>

<mosaic_0001>
module attributes {stable_mosaic.version = 11 : i64} {
  func.func @_sqa_kernel(%arg0: i32, %arg1: memref<2x2x4x256xf32, #tpu.memory_space<vmem>>, %arg2: memref<4x4x1xf32, #tpu.memory_space<vmem>>, %arg3: memref<2x2x4x256xf32, #tpu.memory_space<vmem>>) attributes {dimension_semantics = [#tpu.dimension_semantics<parallel>], iteration_bounds = array<i64: 4>, scalar_prefetch = 0 : i64, scratch_operands = 0 : i64, tpu.core_type = #tpu.core_type<tc>, window_params = [{transform_indices = @transform_0, window_bounds = array<i64: 2, 2, 4, 256>}, {pipeline_mode = #tpu.pipeline_mode<synchronous>, transform_indices = @transform_1, window_bounds = array<i64: 4, 4, 1>}, {transform_indices = @transform_2, window_bounds = array<i64: 2, 2, 4, 256>}]} {
    %c0 = arith.constant 0 : index
    %c0_0 = arith.constant 0 : index
    %c0_1 = arith.constant 0 : index
    %c0_2 = arith.constant 0 : index
    %0 = vector.load %arg1[%c0, %c0_0, %c0_1, %c0_2] : memref<2x2x4x256xf32, #tpu.memory_space<vmem>>, vector<2x1x4x256xf32>
    %c0_3 = arith.constant 0 : index
    %c1 = arith.constant 1 : index
    %c0_4 = arith.constant 0 : index
    %c0_5 = arith.constant 0 : index
    %1 = vector.load %arg1[%c0_3, %c1, %c0_4, %c0_5] : memref<2x2x4x256xf32, #tpu.memory_space<vmem>>, vector<2x1x4x256xf32>
    %c0_6 = arith.constant 0 : index
    %c0_7 = arith.constant 0 : index
    %c0_8 = arith.constant 0 : index
    %2 = vector.load %arg2[%c0_6, %c0_7, %c0_8] : memref<4x4x1xf32, #tpu.memory_space<vmem>>, vector<1x4x1xf32>
    %3 = vector.shape_cast %2 : vector<1x4x1xf32> to vector<4x1xf32>
    %c1_9 = arith.constant 1 : index
    %c0_10 = arith.constant 0 : index
    %c0_11 = arith.constant 0 : index
    %4 = vector.load %arg2[%c1_9, %c0_10, %c0_11] : memref<4x4x1xf32, #tpu.memory_space<vmem>>, vector<1x4x1xf32>
    %5 = vector.shape_cast %4 : vector<1x4x1xf32> to vector<4x1xf32>
    %c2 = arith.constant 2 : index
    %c0_12 = arith.constant 0 : index
    %c0_13 = arith.constant 0 : index
    %6 = vector.load %arg2[%c2, %c0_12, %c0_13] : memref<4x4x1xf32, #tpu.memory_space<vmem>>, vector<1x4x1xf32>
    %7 = vector.shape_cast %6 : vector<1x4x1xf32> to vector<4x1xf32>
    %c3 = arith.constant 3 : index
    %c0_14 = arith.constant 0 : index
    %c0_15 = arith.constant 0 : index
    %8 = vector.load %arg2[%c3, %c0_14, %c0_15] : memref<4x4x1xf32, #tpu.memory_space<vmem>>, vector<1x4x1xf32>
    %9 = vector.shape_cast %8 : vector<1x4x1xf32> to vector<4x1xf32>
    %cst = arith.constant dense<0.000000e+00> : vector<2x1x4xf32>
    %10 = vector.multi_reduction <add>, %0, %cst [3] : vector<2x1x4x256xf32> to vector<2x1x4xf32>
    %11 = vector.shape_cast %10 : vector<2x1x4xf32> to vector<2x1x4x1xf32>
    %cst_16 = arith.constant 3.906250e-03 : f32
    %12 = vector.broadcast %cst_16 : f32 to vector<2x1x4x1xf32>
    %13 = arith.mulf %11, %12 : vector<2x1x4x1xf32>
    %14 = vector.shape_cast %3 : vector<4x1xf32> to vector<1x1x4x1xf32>
    %15 = vector.broadcast %14 : vector<1x1x4x1xf32> to vector<2x1x4x1xf32>
    %16 = arith.mulf %15, %13 : vector<2x1x4x1xf32>
    %17 = vector.shape_cast %5 : vector<4x1xf32> to vector<1x1x4x1xf32>
    %18 = vector.broadcast %17 : vector<1x1x4x1xf32> to vector<2x1x4x1xf32>
    %19 = arith.addf %16, %18 : vector<2x1x4x1xf32>
    %20 = arith.negf %19 : vector<2x1x4x1xf32>
    %21 = math.exp %20 : vector<2x1x4x1xf32>
    %cst_17 = arith.constant 1.000000e+00 : f32
    %22 = vector.broadcast %cst_17 : f32 to vector<2x1x4x1xf32>
    %23 = arith.addf %22, %21 : vector<2x1x4x1xf32>
    %24 = arith.divf %22, %23 : vector<2x1x4x1xf32>
    %25 = vector.broadcast %24 : vector<2x1x4x1xf32> to vector<2x1x4x256xf32>
    %26 = arith.mulf %0, %25 : vector<2x1x4x256xf32>
    %c0_18 = arith.constant 0 : index
    %c0_19 = arith.constant 0 : index
    %c0_20 = arith.constant 0 : index
    %c0_21 = arith.constant 0 : index
    %27 = vector.load %arg3[%c0_18, %c0_19, %c0_20, %c0_21] : memref<2x2x4x256xf32, #tpu.memory_space<vmem>>, vector<2x1x4x256xf32>
    tpu.vector_store %arg3[%c0_18, %c0_19, %c0_20, %c0_21], %26 {strides = array<i32>} : memref<2x2x4x256xf32, #tpu.memory_space<vmem>>, vector<2x1x4x256xf32>,
    %cst_22 = arith.constant dense<0.000000e+00> : vector<2x1x4xf32>
    %28 = vector.multi_reduction <add>, %1, %cst_22 [3] : vector<2x1x4x256xf32> to vector<2x1x4xf32>
    %29 = vector.shape_cast %28 : vector<2x1x4xf32> to vector<2x1x4x1xf32>
    %cst_23 = arith.constant 3.906250e-03 : f32
    %30 = vector.broadcast %cst_23 : f32 to vector<2x1x4x1xf32>
    %31 = arith.mulf %29, %30 : vector<2x1x4x1xf32>
    %32 = vector.broadcast %31 : vector<2x1x4x1xf32> to vector<2x1x4x256xf32>
    %33 = arith.subf %1, %32 : vector<2x1x4x256xf32>
    %34 = arith.mulf %33, %33 : vector<2x1x4x256xf32>
    %cst_24 = arith.constant dense<0.000000e+00> : vector<2x1x4xf32>
    %35 = vector.multi_reduction <add>, %34, %cst_24 [3] : vector<2x1x4x256xf32> to vector<2x1x4xf32>
    %36 = vector.shape_cast %35 : vector<2x1x4xf32> to vector<2x1x4x1xf32>
    %cst_25 = arith.constant 3.906250e-03 : f32
    %37 = vector.broadcast %cst_25 : f32 to vector<2x1x4x1xf32>
    %38 = arith.mulf %36, %37 : vector<2x1x4x1xf32>
    %cst_26 = arith.constant 9.99999974E-6 : f32
    %39 = vector.broadcast %cst_26 : f32 to vector<2x1x4x1xf32>
    %40 = arith.addf %38, %39 : vector<2x1x4x1xf32>
    %41 = math.rsqrt %40 : vector<2x1x4x1xf32>
    %42 = vector.broadcast %41 : vector<2x1x4x1xf32> to vector<2x1x4x256xf32>
    %43 = arith.mulf %33, %42 : vector<2x1x4x256xf32>
    %44 = vector.shape_cast %7 : vector<4x1xf32> to vector<1x1x4x1xf32>
    %45 = vector.broadcast %44 : vector<1x1x4x1xf32> to vector<2x1x4x256xf32>
    %46 = arith.mulf %45, %43 : vector<2x1x4x256xf32>
    %47 = vector.shape_cast %9 : vector<4x1xf32> to vector<1x1x4x1xf32>
    %48 = vector.broadcast %47 : vector<1x1x4x1xf32> to vector<2x1x4x256xf32>
    %49 = arith.addf %46, %48 : vector<2x1x4x256xf32>
    %50 = arith.negf %49 : vector<2x1x4x256xf32>
    %51 = math.exp %50 : vector<2x1x4x256xf32>
    %cst_27 = arith.constant 1.000000e+00 : f32
    %52 = vector.broadcast %cst_27 : f32 to vector<2x1x4x256xf32>
    %53 = arith.addf %52, %51 : vector<2x1x4x256xf32>
    %54 = arith.divf %52, %53 : vector<2x1x4x256xf32>
    %55 = arith.mulf %1, %54 : vector<2x1x4x256xf32>
    %c0_28 = arith.constant 0 : index
    %c1_29 = arith.constant 1 : index
    %c0_30 = arith.constant 0 : index
    %c0_31 = arith.constant 0 : index
    %56 = vector.load %arg3[%c0_28, %c1_29, %c0_30, %c0_31] : memref<2x2x4x256xf32, #tpu.memory_space<vmem>>, vector<2x1x4x256xf32>
    tpu.vector_store %arg3[%c0_28, %c1_29, %c0_30, %c0_31], %55 {strides = array<i32>} : memref<2x2x4x256xf32, #tpu.memory_space<vmem>>, vector<2x1x4x256xf32>,
    return
  }
  func.func @transform_0(%arg0: i32) -> (i32, i32, i32, i32) {
    %c0_i32 = arith.constant 0 : i32
    %c0_i32_0 = arith.constant 0 : i32
    %c0_i32_1 = arith.constant 0 : i32
    %c0_i32_2 = arith.constant 0 : i32
    return %arg0, %c0_i32, %c0_i32_0, %c0_i32_1 : i32, i32, i32, i32
  }
  func.func @transform_1(%arg0: i32) -> (i32, i32, i32) {
    %c0_i32 = arith.constant 0 : i32
    %c0_i32_0 = arith.constant 0 : i32
    %c0_i32_1 = arith.constant 0 : i32
    %c0_i32_2 = arith.constant 0 : i32
    return %c0_i32, %c0_i32_0, %c0_i32_1 : i32, i32, i32
  }
  func.func @transform_2(%arg0: i32) -> (i32, i32, i32, i32) {
    %c0_i32 = arith.constant 0 : i32
    %c0_i32_0 = arith.constant 0 : i32
    %c0_i32_1 = arith.constant 0 : i32
    %c0_i32_2 = arith.constant 0 : i32
    return %arg0, %c0_i32, %c0_i32_0, %c0_i32_1 : i32, i32, i32, i32
  }
}

</mosaic_0001>

<llo_original>
// kernel: squeeze_attention_forward.1
$region0: #{squeeze_attention_forward.1}
  #allocation0 [shape = 'u32[]', space=smem, size = 0x4, offset = 0x4, fixed_abs, tag = 'smem constant byte address 0x4 - core index']
  #allocation1 [shape = 'u32[144,128]{1,0:T(1,128)}', space=vmem, size = 0x12000, scoped, tag = 'internal scratch']
  %s0 = inlined_call_operand.vmem [shape: f32[8,2,4,256], index: 0, kind: input, shape index: {}]
  %s1 = inlined_call_operand.vmem [shape: f32[4,4,1], index: 1, kind: input, shape index: {}]
  %s2 = inlined_call_operand.vmem [shape: f32[8,2,4,256], index: 2, kind: output, shape index: {}]
  %s3 = sld [smem:[#allocation0]]
  $region41: #{squeeze_attention_forward.1} parent=0
    _
  %s5 = ssub.s32 1, %s3
  %s6 = scalar_select 0, %s5, %s3
  loop: start=0, step=1, limit=6
  $region2: #{squeeze_attention_forward.1} parent=0 // loop_pre_header
    _
  $region3: #{squeeze_attention_forward.1} parent=0 // loop_header
    %s8 = sphi 0, %s12
    %p9 = scmp.ge.s32.totalorder %s8, 6
    %s18 = sphi 0, %s20
    %s21 = sphi 0, %s18
    %s22 = sphi 0, %s21
    %s38 = sphi 0, %s22
    %s42 = sphi 0, %s42
    %s44 = sphi 0, %s42
    %s45 = sphi 0, %s44
    %s59 = sphi 0, %s45
    %s65 = sphi 0, %s67
    %s68 = sphi 0, %s65
    %s69 = sphi 0, %s68
    %s85 = sphi 0, %s69
  $region4: #{squeeze_attention_forward.1} parent=0 // loop_header_branch
    %11 = sbr.rel (%p9) target = $region8
  $region5: #{squeeze_attention_forward.1} parent=0 // loop_body
    %s13 = ssub.s32 %s8, 1
    %s14 = ssub.s32 %s8, 2
    %s15 = sadd.s32 %s8, 1
    %s16 = ssub.s32 %s8, %s15
    %p17 = scmp.eq.s32.totalorder %s16, 0
    %s19 = sadd.s32 %s18, 1
    %s20 = scalar_select %p17, %s18, %s19
    %p23 = pneg %p17
    %p24 = scmp.eq.s32.totalorder %s8, 3
    %p25 = por %p23, %p24
    %p26 = scmp.ne.s32.totalorder %s18, %s21
    %p27 = scmp.eq.s32.totalorder %s8, 0
    %p28 = por %p26, %p27
    %p29 = scmp.ne.s32.totalorder %s18, %s21
    %p30 = scmp.eq.s32.totalorder %s13, 3
    %p31 = por %p29, %p30
    %p32 = scmp.ne.s32.totalorder %s21, %s22
    %p33 = scmp.eq.s32.totalorder %s13, 0
    %p34 = por %p32, %p33
    %p35 = scmp.ne.s32.totalorder %s21, %s22
    %p36 = scmp.eq.s32.totalorder %s14, 3
    %p37 = por %p35, %p36
    %p39 = scmp.ne.s32.totalorder %s22, %s38
    %p40 = scmp.eq.s32.totalorder %s14, 0
    %p41 = por %p39, %p40
    %s43 = sadd.s32 %s42, 1
    %p46 = scmp.eq.s32.totalorder %s8, 3
    %p47 = scmp.ne.s32.totalorder %s42, %s44
    %p48 = scmp.eq.s32.totalorder %s8, 0
    %p49 = por %p47, %p48
    %p50 = scmp.ne.s32.totalorder %s42, %s44
    %p51 = scmp.eq.s32.totalorder %s13, 3
    %p52 = por %p50, %p51
    %p53 = scmp.ne.s32.totalorder %s44, %s45
    %p54 = scmp.eq.s32.totalorder %s13, 0
    %p55 = por %p53, %p54
    %p56 = scmp.ne.s32.totalorder %s44, %s45
    %p57 = scmp.eq.s32.totalorder %s14, 3
    %p58 = por %p56, %p57
    %p60 = scmp.ne.s32.totalorder %s45, %s59
    %p61 = scmp.eq.s32.totalorder %s14, 0
    %p62 = por %p60, %p61
    %s63 = ssub.s32 %s8, %s15
    %p64 = scmp.eq.s32.totalorder %s63, 0
    %s66 = sadd.s32 %s65, 1
    %s67 = scalar_select %p64, %s65, %s66
    %p70 = pneg %p64
    %p71 = scmp.eq.s32.totalorder %s8, 3
    %p72 = por %p70, %p71
    %p73 = scmp.ne.s32.totalorder %s65, %s68
    %p74 = scmp.eq.s32.totalorder %s8, 0
    %p75 = por %p73, %p74
    %p76 = scmp.ne.s32.totalorder %s65, %s68
    %p77 = scmp.eq.s32.totalorder %s13, 3
    %p78 = por %p76, %p77
    %p79 = scmp.ne.s32.totalorder %s68, %s69
    %p80 = scmp.eq.s32.totalorder %s13, 0
    %p81 = por %p79, %p80
    %p82 = scmp.ne.s32.totalorder %s68, %s69
    %p83 = scmp.eq.s32.totalorder %s14, 3
    %p84 = por %p82, %p83
    %p86 = scmp.ne.s32.totalorder %s69, %s85
    %p87 = scmp.eq.s32.totalorder %s14, 0
    %p88 = por %p86, %p87
    %p89 = scmp.le.s32.totalorder 1, %s8
    %p90 = scmp.lt.s32.totalorder %s8, 5
    %p91 = pnand %p89, %p90
    %p92 = pneg %p91
    // Predicated region
    $region9: #{squeeze_attention_forward.1} parent=5 // pred_check
      _
    $region10: #{squeeze_attention_forward.1} parent=5 // pred_check_branch
      %94 = sbr.rel (%p91) target = $region12
    $region11: #{squeeze_attention_forward.1} parent=5 // pred_region
      %s95 = ssub.s32 %s8, 1
      // Predicated region
      $region13: #{squeeze_attention_forward.1} parent=11 // pred_check
        %p96 = pneg %p55
      $region14: #{squeeze_attention_forward.1} parent=11 // pred_check_branch
        %98 = sbr.rel (%p96) target = $region16
      $region15: #{squeeze_attention_forward.1} parent=11 // pred_region
        _
      $region16: #{squeeze_attention_forward.1} parent=11 // pred_fallthru
        _
    $region12: #{squeeze_attention_forward.1} parent=5 // pred_fallthru
      _
    %p99 = scmp.lt.s32.totalorder %s8, 4
    // Predicated region
    $region17: #{squeeze_attention_forward.1} parent=5 // pred_check
      %p100 = pneg %p99
    $region18: #{squeeze_attention_forward.1} parent=5 // pred_check_branch
      %102 = sbr.rel (%p100) target = $region20
    $region19: #{squeeze_attention_forward.1} parent=5 // pred_region
      // Predicated region
      $region21: #{squeeze_attention_forward.1} parent=19 // pred_check
        %p103 = pneg %p28
      $region22: #{squeeze_attention_forward.1} parent=19 // pred_check_branch
        %105 = sbr.rel (%p103) target = $region24
      $region23: #{squeeze_attention_forward.1} parent=19 // pred_region
        %s106 = smul.u32 2, %s8
        %p107 = scmp.lt.s32.totalorder %s106, 7
        %s108 = scalar_select %p107, %s106, 7
        %s109 = smul.addr %s108, 4
        %s110 = smul.addr %s109, 4
        %s111 = scalar_lea.vmem %s0, %s110
        %s112 = smul.u32 2, %s8
      $region24: #{squeeze_attention_forward.1} parent=19 // pred_fallthru
        _
    $region20: #{squeeze_attention_forward.1} parent=5 // pred_fallthru
      _
    %p113 = scmp.le.s32.totalorder 1, %s8
    %p114 = scmp.lt.s32.totalorder %s8, 5
    %p115 = pnand %p113, %p114
    %p116 = pneg %p115
    // Predicated region
    $region25: #{squeeze_attention_forward.1} parent=5 // pred_check
      _
    $region26: #{squeeze_attention_forward.1} parent=5 // pred_check_branch
      %118 = sbr.rel (%p115) target = $region28
    $region27: #{squeeze_attention_forward.1} parent=5 // pred_region
      %s119 = ssub.s32 %s8, 1
      %s120 = smul.u32 2, %s13
      %p121 = scmp.lt.s32.totalorder %s120, 7
      %s122 = scalar_select %p121, %s120, 7
      %s123 = smul.addr %s122, 4
      %s124 = smul.addr %s123, 4
      %s125 = scalar_lea.vmem %s0, %s124
      %p126 = pneg %p34
      %p127 = pneg %p31
      %p128 = pneg %p55
      %p129 = pneg %p52
      %p130 = pneg %p81
      %p131 = pneg %p78
      %s132 = smul.u32 2, %s13
      %p133 = scmp.lt.s32.totalorder %s132, 7
      %s134 = scalar_select %p133, %s132, 7
      %s135 = smul.addr %s134, 4
      %s136 = smul.addr %s135, 4
      %s137 = scalar_lea.vmem %s2, %s136
      %s138 = smul.u32 2, %s13
      %p139 = scmp.lt.s32.totalorder %s138, 7
      %s140 = scalar_select %p139, %s138, 7
      %s141 = smul.addr %s140, 4
      %s142 = smul.addr %s141, 4
      %s143 = scalar_lea.vmem %s0, %s142
      %s144 = smul.u32 2, %s13
      %s145 = smul.u32 2, %s13
      %p146 = scmp.lt.s32.totalorder %s145, 7
      %s147 = scalar_select %p146, %s145, 7
      %s148 = smul.addr %s147, 4
      %s149 = smul.addr %s148, 4
      %s150 = scalar_lea.vmem %s2, %s149
      %s151 = smul.u32 2, %s13
      %v152 = vld [vmem:[%s143] sm:$0xff]
      %v153 = vld [vmem:[%s143 + $0x10] sm:$0xff]
      %s154 = scalar_lea.vmem %s143, 8
      %v155 = vld [vmem:[%s154] sm:$0xff]
      %v156 = vld [vmem:[%s154 + $0x10] sm:$0xff]
      %v157 = vld [vmem:[%s1] sm:$0xf]
      %s158 = scalar_lea.vmem %s1, 4
      %v159 = vld [vmem:[%s158] sm:$0xf]
      %s160 = scalar_lea.vmem %s1, 8
      %v161 = vld [vmem:[%s160] sm:$0xf]
      %s162 = scalar_lea.vmem %s1, 12
      %v163 = vld [vmem:[%s162] sm:$0xf]
      %v166 = vcombine.high %v152, %v152
      %v167 = vcombine.high %v153, %v153
      %vm170 = vcmask 1043456
      %v171 = vsel %vm170, %v152, 0.0
      %v172 = vsel %vm170, %v166, 0.0
      %v173 = vadd.f32 %v171, %v172
      %174 = vadd.xlane.f32.xlu0 %v173
      %v175 = vpop.xlane.xlu0 %174
      %v176 = vsel %vm170, %v153, 0.0
      %v177 = vsel %vm170, %v167, 0.0
      %v178 = vadd.f32 %v176, %v177
      %179 = vadd.xlane.f32.xlu0 %v178
      %v180 = vpop.xlane.xlu0 %179
      %v181 = vmul.f32 %v175, 0.00390625
      %v182 = vmul.f32 %v180, 0.00390625
      %v183 = vmul.f32 %v157, %v181
      %v184 = vmul.f32 %v157, %v182
      %v185 = vadd.f32 %v183, %v159
      %v186 = vadd.f32 %v184, %v159
      %v187 = vxor.u32 %v185, 2147483648
      %v188 = vxor.u32 %v186, 2147483648
      %v189 = vmul.f32 %v187, 1.442695
      %v190 = vpow.pop %v189
      %v191 = vmul.f32 %v188, 1.442695
      %v192 = vpow.pop %v191
      %v193 = vadd.f32 %v190, 1.0
      %v194 = vadd.f32 %v192, 1.0
      %v195 = vrcp.pop %v193
      %v196 = vmul.f32 1.0, %v195
      %v197 = vrcp.pop %v194
      %v198 = vmul.f32 1.0, %v197
      %200 = vset.pattern.permute.xlu0 0
      %201 = vperm.xlu0 %200, %v196
      %v202 = vpop.permute.xlu0 %201
      %204 = vset.pattern.permute.xlu0 0
      %205 = vperm.xlu0 %204, %v198
      %v206 = vpop.permute.xlu0 %205
      %v208 = vunpack.c.l.s4 839922192
      %v209 = vunpack.c.0.s8 %v208
      %v210 = vlaneseq
      %v211 = vshrl.u32 %v210, 7
      %v212 = vsub.s32 %v209, %v211
      %v213 = vrot.slane %v202, %v212
      %v215 = vunpack.c.l.s4 839922192
      %v216 = vunpack.c.0.s8 %v215
      %v217 = vlaneseq
      %v218 = vshrl.u32 %v217, 7
      %v219 = vsub.s32 %v216, %v218
      %v220 = vrot.slane %v206, %v219
      %v223 = vmul.f32 %v152, %v213
      %v224 = vmul.f32 %v153, %v220
      %225 = vst [vmem:[%s150] sm:$0xff] %v223
      %226 = vst [vmem:[%s150 + $0x10] sm:$0xff] %v224
      %v229 = vcombine.high %v155, %v155
      %v230 = vcombine.high %v156, %v156
      %v233 = vsel %vm170, %v155, 0.0
      %v234 = vsel %vm170, %v229, 0.0
      %v235 = vadd.f32 %v233, %v234
      %236 = vadd.xlane.f32.xlu0 %v235
      %v237 = vpop.xlane.xlu0 %236
      %v238 = vsel %vm170, %v156, 0.0
      %v239 = vsel %vm170, %v230, 0.0
      %v240 = vadd.f32 %v238, %v239
      %241 = vadd.xlane.f32.xlu0 %v240
      %v242 = vpop.xlane.xlu0 %241
      %v243 = vmul.f32 %v237, 0.00390625
      %v244 = vmul.f32 %v242, 0.00390625
      %v248 = vunpack.c.l.s4 839922192
      %v249 = vunpack.c.0.s8 %v248
      %v250 = vlaneseq
      %v251 = vshrl.u32 %v250, 7
      %v252 = vsub.s32 %v249, %v251
      %v253 = vrot.slane %v243, %v252
      %v255 = vunpack.c.l.s4 839922192
      %v256 = vunpack.c.0.s8 %v255
      %v257 = vlaneseq
      %v258 = vshrl.u32 %v257, 7
      %v259 = vsub.s32 %v256, %v258
      %v260 = vrot.slane %v244, %v259
      %v263 = vsub.f32 %v155, %v253
      %v264 = vsub.f32 %v156, %v260
      %v265 = vmul.f32 %v263, %v263
      %v266 = vmul.f32 %v264, %v264
      %v269 = vcombine.high %v265, %v265
      %v270 = vcombine.high %v266, %v266
      %v273 = vsel %vm170, %v265, 0.0
      %v274 = vsel %vm170, %v269, 0.0
      %v275 = vadd.f32 %v273, %v274
      %276 = vadd.xlane.f32.xlu0 %v275
      %v277 = vpop.xlane.xlu0 %276
      %v278 = vsel %vm170, %v266, 0.0
      %v279 = vsel %vm170, %v270, 0.0
      %v280 = vadd.f32 %v278, %v279
      %281 = vadd.xlane.f32.xlu0 %v280
      %v282 = vpop.xlane.xlu0 %281
      %v283 = vmul.f32 %v277, 0.00390625
      %v284 = vmul.f32 %v282, 0.00390625
      %v285 = vadd.f32 %v283, 1e-05
      %v286 = vadd.f32 %v284, 1e-05
      %v287 = vrsqrt.pop %v285
      %v288 = vrsqrt.pop %v286
      %v292 = vunpack.c.l.s4 839922192
      %v293 = vunpack.c.0.s8 %v292
      %v294 = vlaneseq
      %v295 = vshrl.u32 %v294, 7
      %v296 = vsub.s32 %v293, %v295
      %v297 = vrot.slane %v287, %v296
      %v299 = vunpack.c.l.s4 839922192
      %v300 = vunpack.c.0.s8 %v299
      %v301 = vlaneseq
      %v302 = vshrl.u32 %v301, 7
      %v303 = vsub.s32 %v300, %v302
      %v304 = vrot.slane %v288, %v303
      %v307 = vmul.f32 %v263, %v297
      %v308 = vmul.f32 %v264, %v304
      %310 = vset.pattern.permute.xlu0 0
      %311 = vperm.xlu0 %310, %v161
      %v312 = vpop.permute.xlu0 %311
      %v316 = vcombine.high %v307, %v307
      %v317 = vcombine.high %v308, %v308
      %v320 = vmul.f32 %v312, %v307
      %v321 = vmul.f32 %v312, %v316
      %v322 = vmul.f32 %v312, %v308
      %v323 = vmul.f32 %v312, %v317
      %325 = vset.pattern.permute.xlu0 0
      %326 = vperm.xlu0 %325, %v163
      %v327 = vpop.permute.xlu0 %326
      %v329 = vadd.f32 %v320, %v327
      %v330 = vadd.f32 %v321, %v327
      %v331 = vadd.f32 %v322, %v327
      %v332 = vadd.f32 %v323, %v327
      %v333 = vxor.u32 %v329, 2147483648
      %v334 = vxor.u32 %v330, 2147483648
      %v335 = vxor.u32 %v331, 2147483648
      %v336 = vxor.u32 %v332, 2147483648
      %v337 = vmul.f32 %v333, 1.442695
      %v338 = vpow.pop %v337
      %v339 = vmul.f32 %v334, 1.442695
      %v340 = vpow.pop %v339
      %v341 = vmul.f32 %v335, 1.442695
      %v342 = vpow.pop %v341
      %v343 = vmul.f32 %v336, 1.442695
      %v344 = vpow.pop %v343
      %v345 = vadd.f32 %v338, 1.0
      %v346 = vadd.f32 %v340, 1.0
      %v347 = vadd.f32 %v342, 1.0
      %v348 = vadd.f32 %v344, 1.0
      %v349 = vrcp.pop %v345
      %v350 = vmul.f32 1.0, %v349
      %v351 = vrcp.pop %v346
      %v352 = vmul.f32 1.0, %v351
      %v353 = vrcp.pop %v347
      %v354 = vmul.f32 1.0, %v353
      %v355 = vrcp.pop %v348
      %v356 = vmul.f32 1.0, %v355
      %v361 = vcombine.low %v350, %v352
      %v362 = vcombine.low %v354, %v356
      %v365 = vmul.f32 %v155, %v361
      %v366 = vmul.f32 %v156, %v362
      %s367 = scalar_lea.vmem %s150, 8
      %368 = vst [vmem:[%s367] sm:$0xff] %v365
      %369 = vst [vmem:[%s367 + $0x10] sm:$0xff] %v366
      %s370 = smul.u32 2, %s13
      %p371 = scmp.lt.s32.totalorder %s370, 7
      %s372 = scalar_select %p371, %s370, 7
      %s373 = smul.addr %s372, 4
      %s374 = smul.addr %s373, 4
      %s375 = scalar_lea.vmem %s2, %s374
      // Predicated region
      $region29: #{squeeze_attention_forward.1} parent=27 // pred_check
        %p376 = pneg %p78
      $region30: #{squeeze_attention_forward.1} parent=27 // pred_check_branch
        %378 = sbr.rel (%p376) target = $region32
      $region31: #{squeeze_attention_forward.1} parent=27 // pred_region
        %s379 = smul.u32 2, %s13
      $region32: #{squeeze_attention_forward.1} parent=27 // pred_fallthru
        _
    $region28: #{squeeze_attention_forward.1} parent=5 // pred_fallthru
      _
    %p380 = scmp.le.s32.totalorder 2, %s8
    // Predicated region
    $region33: #{squeeze_attention_forward.1} parent=5 // pred_check
      %p381 = pneg %p380
    $region34: #{squeeze_attention_forward.1} parent=5 // pred_check_branch
      %383 = sbr.rel (%p381) target = $region36
    $region35: #{squeeze_attention_forward.1} parent=5 // pred_region
      %s384 = ssub.s32 %s8, 2
      // Predicated region
      $region37: #{squeeze_attention_forward.1} parent=35 // pred_check
        %p385 = pneg %p84
      $region38: #{squeeze_attention_forward.1} parent=35 // pred_check_branch
        %387 = sbr.rel (%p385) target = $region40
      $region39: #{squeeze_attention_forward.1} parent=35 // pred_region
        %s388 = smul.u32 2, %s14
        %p389 = scmp.lt.s32.totalorder %s388, 7
        %s390 = scalar_select %p389, %s388, 7
        %s391 = smul.addr %s390, 4
        %s392 = smul.addr %s391, 4
        %s393 = scalar_lea.vmem %s2, %s392
      $region40: #{squeeze_attention_forward.1} parent=35 // pred_fallthru
        _
    $region36: #{squeeze_attention_forward.1} parent=5 // pred_fallthru
      _
  $region6: #{squeeze_attention_forward.1} parent=0 // loop_footer
    %s12 = sadd.s32 1, %s8
  $region7: #{squeeze_attention_forward.1} parent=0 // loop_footer_branch
    %7 = sbr.rel target = $region3
  $region8: #{squeeze_attention_forward.1} parent=0 // loop_exit
    _

</llo_original>
